<compile_context>
chip_gen: v5e
topology: v5e:2x2
jax: 0.10.0
libtpu: 0.0.40
codegen_flags: <defaults>
</compile_context>

<pallas_src>
import jax
import jax.numpy as jnp
from jax.experimental import pallas as pl
from jax.experimental.pallas import tpu as pltpu


def _mlp_kernel(x_ref, w1_ref, b1_ref, w2_ref, b2_ref, w3_ref, b3_ref, o_ref):
    # In-kernel f32 -> bf16 cast of the activation tile (free under MXU slack).
    x = x_ref[...].astype(w1_ref.dtype)

    # Layer 1: fc1 (bf16 operands on the MXU, f32 accumulation) + bias + ReLU.
    h1 = jnp.dot(x, w1_ref[...], preferred_element_type=jnp.float32)
    # Cast-then-ReLU: sign-preserving, identical result, bf16 max() on v6e/v7x VALUs.
    h1 = jnp.maximum((h1 + b1_ref[...]).astype(w2_ref.dtype), 0)
    # Dropout (p=0.5) -> identity at inference time.

    # Layer 2: fc2 + bias + ReLU.
    h2 = jnp.dot(h1, w2_ref[...], preferred_element_type=jnp.float32)
    h2 = jnp.maximum((h2 + b2_ref[...]).astype(w3_ref.dtype), 0)
    # Dropout -> identity.

    # Layer 3: fc3 (no activation), narrow (un-padded) output columns.
    out = jnp.dot(h2, w3_ref[...], preferred_element_type=jnp.float32) + b3_ref[...]
    o_ref[...] = out.astype(o_ref.dtype)


def _round_up(n, m):
    return ((n + m - 1) // m) * m


def mlp_forward(x, w1, b1, w2, b2, w3, b3, *, tile_b=1024, use_bf16=True):
    """y = relu(x@W1+b1) -> relu(.@W2+b2) -> .@W3+b3  (dropout = identity, eval mode)."""
    B, in_dim = x.shape
    h1_dim = w1.shape[1]          # 512
    h2_dim = w2.shape[1]          # 256
    out_dim = w3.shape[1]

    SUB = 16 if use_bf16 else 8   # sublane pack for the batch tile

    # Batch tile: MXU-friendly, never bigger than ~half the batch (rounded up) so that
    # large batches always give >= 2 grid steps (v7x megacore occupancy), and never
    # smaller than one sublane pack.
    half_b = _round_up(pl.cdiv(B, 2), SUB)
    tile_b = max(SUB, min(_round_up(tile_b, SUB), half_b))
    grid = (pl.cdiv(B, tile_b),)

    mm_dtype = jnp.bfloat16 if use_bf16 else x.dtype
    # Weights cast once in the wrapper (tiny, VMEM-resident via constant index_maps).
    w1m = w1.astype(mm_dtype)
    w2m = w2.astype(mm_dtype)
    w3m = w3.astype(mm_dtype)
    # Biases stay f32 and broadcast as (1, D) rows inside the kernel.
    b1r = b1.reshape(1, h1_dim).astype(jnp.float32)
    b2r = b2.reshape(1, h2_dim).astype(jnp.float32)
    b3r = b3.reshape(1, out_dim).astype(jnp.float32)

    itm = 2 if use_bf16 else 4
    flops = 2 * B * (in_dim * h1_dim + h1_dim * h2_dim + h2_dim * out_dim)
    bytes_accessed = (
        B * in_dim * 4                                            # x read (f32)
        + (in_dim * h1_dim + h1_dim * h2_dim + h2_dim * out_dim) * itm
        + (h1_dim + h2_dim + out_dim) * 4                         # biases
        + B * out_dim * 4                                         # output write (f32)
    )

    out = pl.pallas_call(
        _mlp_kernel,
        out_shape=jax.ShapeDtypeStruct((B, out_dim), jnp.float32),
        grid_spec=pltpu.PrefetchScalarGridSpec(
            num_scalar_prefetch=0,
            grid=grid,
            in_specs=[
                pl.BlockSpec((tile_b, in_dim), lambda i: (i, 0)),   # x tile (f32)
                pl.BlockSpec((in_dim, h1_dim), lambda i: (0, 0)),   # W1 (resident)
                pl.BlockSpec((1, h1_dim), lambda i: (0, 0)),        # b1
                pl.BlockSpec((h1_dim, h2_dim), lambda i: (0, 0)),   # W2 (resident)
                pl.BlockSpec((1, h2_dim), lambda i: (0, 0)),        # b2
                pl.BlockSpec((h2_dim, out_dim), lambda i: (0, 0)),  # W3 (resident, narrow)
                pl.BlockSpec((1, out_dim), lambda i: (0, 0)),       # b3
            ],
            out_specs=pl.BlockSpec((tile_b, out_dim), lambda i: (i, 0)),
        ),
        compiler_params=pltpu.CompilerParams(
            dimension_semantics=("parallel",),
        ),
        cost_estimate=pl.CostEstimate(
            flops=flops, transcendentals=0, bytes_accessed=bytes_accessed
        ),
    )(x, w1m, b1r, w2m, b2r, w3m, b3r)

    return out


def _init_params(key, input_size, output_size, dtype=jnp.float32):
    """Deterministic init mimicking nn.Linear's uniform(-1/sqrt(fan_in), 1/sqrt(fan_in))."""
    dims = [(input_size, 512), (512, 256), (256, output_size)]
    params = []
    for (fan_in, fan_out) in dims:
        key, kw, kb = jax.random.split(key, 3)
        bound = 1.0 / jnp.sqrt(fan_in)
        w = jax.random.uniform(kw, (fan_in, fan_out), dtype, -bound, bound)
        b = jax.random.uniform(kb, (fan_out,), dtype, -bound, bound)
        params += [w, b]
    return params


def _reference(x, w1, b1, w2, b2, w3, b3, use_bf16=True):
    """Pure-JAX reference matching the kernel's bf16-operand / f32-accumulate numerics."""
    def cast(a):
        return a.astype(jnp.bfloat16).astype(jnp.float32) if use_bf16 else a
    h1 = jnp.maximum(jnp.dot(cast(x), cast(w1)) + b1, 0.0)
    h2 = jnp.maximum(jnp.dot(cast(h1), cast(w2)) + b2, 0.0)
    return jnp.dot(cast(h2), cast(w3)) + b3


if __name__ == "__main__":
    key = jax.random.PRNGKey(0)
    input_size = 32     # CIC-IDS-2018-like flow feature count (small test size)
    output_size = 16

    kx, kp, kx2 = jax.random.split(key, 3)
    w1, b1, w2, b2, w3, b3 = _init_params(kp, input_size, output_size)

    # Case 1: tiny batch (single grid step, partial block).
    x = jax.random.normal(kx, (8, input_size), dtype=jnp.float32)
    out = jax.block_until_ready(mlp_forward(x, w1, b1, w2, b2, w3, b3))
    ref = _reference(x, w1, b1, w2, b2, w3, b3)
    assert out.shape == (8, output_size)
    assert jnp.allclose(out, ref, atol=1e-2, rtol=1e-2), "mismatch vs reference (case 1)"

    # Case 2: non-multiple batch with multiple grid steps (exercises partial last block + tiling).
    x2 = jax.random.normal(kx2, (1000, input_size), dtype=jnp.float32)
    out2 = jax.block_until_ready(mlp_forward(x2, w1, b1, w2, b2, w3, b3, tile_b=256))
    ref2 = _reference(x2, w1, b1, w2, b2, w3, b3)
    assert out2.shape == (1000, output_size)
    assert jnp.allclose(out2, ref2, atol=1e-2, rtol=1e-2), "mismatch vs reference (case 2)"

    print("KERNEL_OK")
</pallas_src>

<mosaic_0001>
module attributes {stable_mosaic.version = 11 : i64} {
  func.func @_mlp_kernel(%arg0: i32, %arg1: memref<16x32xf32, #tpu.memory_space<vmem>>, %arg2: memref<32x512xbf16, #tpu.memory_space<vmem>>, %arg3: memref<1x512xf32, #tpu.memory_space<vmem>>, %arg4: memref<512x256xbf16, #tpu.memory_space<vmem>>, %arg5: memref<1x256xf32, #tpu.memory_space<vmem>>, %arg6: memref<256x16xbf16, #tpu.memory_space<vmem>>, %arg7: memref<1x16xf32, #tpu.memory_space<vmem>>, %arg8: memref<16x16xf32, #tpu.memory_space<vmem>>) attributes {dimension_semantics = [#tpu.dimension_semantics<parallel>], iteration_bounds = array<i64: 1>, scalar_prefetch = 0 : i64, scratch_operands = 0 : i64, tpu.core_type = #tpu.core_type<tc>, window_params = [{transform_indices = @transform_0, window_bounds = array<i64: 16, 32>}, {pipeline_mode = #tpu.pipeline_mode<synchronous>, transform_indices = @transform_1, window_bounds = array<i64: 32, 512>}, {pipeline_mode = #tpu.pipeline_mode<synchronous>, transform_indices = @transform_2, window_bounds = array<i64: 1, 512>}, {pipeline_mode = #tpu.pipeline_mode<synchronous>, transform_indices = @transform_3, window_bounds = array<i64: 512, 256>}, {pipeline_mode = #tpu.pipeline_mode<synchronous>, transform_indices = @transform_4, window_bounds = array<i64: 1, 256>}, {pipeline_mode = #tpu.pipeline_mode<synchronous>, transform_indices = @transform_5, window_bounds = array<i64: 256, 16>}, {pipeline_mode = #tpu.pipeline_mode<synchronous>, transform_indices = @transform_6, window_bounds = array<i64: 1, 16>}, {transform_indices = @transform_7, window_bounds = array<i64: 16, 16>}]} {
    %c0 = arith.constant 0 : index
    %c0_0 = arith.constant 0 : index
    %0 = vector.load %arg1[%c0, %c0_0] : memref<16x32xf32, #tpu.memory_space<vmem>>, vector<16x32xf32>
    %1 = arith.truncf %0 : vector<16x32xf32> to vector<16x32xbf16>
    %c0_1 = arith.constant 0 : index
    %c0_2 = arith.constant 0 : index
    %2 = vector.load %arg2[%c0_1, %c0_2] : memref<32x512xbf16, #tpu.memory_space<vmem>>, vector<32x512xbf16>
    %cst = arith.constant dense<0.000000e+00> : vector<16x512xf32>
    %3 = tpu.matmul %1, %2, %cst {dimension_numbers = #tpu.dot_dimension_numbers<[1], [0], [0], [1], [0, 0, 1, 1], [], []>} : vector<16x32xbf16>, vector<32x512xbf16>, vector<16x512xf32> -> vector<16x512xf32>
    %c0_3 = arith.constant 0 : index
    %c0_4 = arith.constant 0 : index
    %4 = vector.load %arg3[%c0_3, %c0_4] : memref<1x512xf32, #tpu.memory_space<vmem>>, vector<1x512xf32>
    %5 = vector.broadcast %4 : vector<1x512xf32> to vector<16x512xf32>
    %6 = arith.addf %3, %5 : vector<16x512xf32>
    %7 = arith.truncf %6 : vector<16x512xf32> to vector<16x512xbf16>
    %cst_5 = arith.constant 0.000000e+00 : bf16
    %8 = vector.broadcast %cst_5 : bf16 to vector<16x512xbf16>
    %9 = arith.maximumf %7, %8 : vector<16x512xbf16>
    %c0_6 = arith.constant 0 : index
    %c0_7 = arith.constant 0 : index
    %10 = vector.load %arg4[%c0_6, %c0_7] : memref<512x256xbf16, #tpu.memory_space<vmem>>, vector<512x256xbf16>
    %cst_8 = arith.constant dense<0.000000e+00> : vector<16x256xf32>
    %11 = tpu.matmul %9, %10, %cst_8 {dimension_numbers = #tpu.dot_dimension_numbers<[1], [0], [0], [1], [0, 0, 1, 1], [], []>} : vector<16x512xbf16>, vector<512x256xbf16>, vector<16x256xf32> -> vector<16x256xf32>
    %c0_9 = arith.constant 0 : index
    %c0_10 = arith.constant 0 : index
    %12 = vector.load %arg5[%c0_9, %c0_10] : memref<1x256xf32, #tpu.memory_space<vmem>>, vector<1x256xf32>
    %13 = vector.broadcast %12 : vector<1x256xf32> to vector<16x256xf32>
    %14 = arith.addf %11, %13 : vector<16x256xf32>
    %15 = arith.truncf %14 : vector<16x256xf32> to vector<16x256xbf16>
    %cst_11 = arith.constant 0.000000e+00 : bf16
    %16 = vector.broadcast %cst_11 : bf16 to vector<16x256xbf16>
    %17 = arith.maximumf %15, %16 : vector<16x256xbf16>
    %c0_12 = arith.constant 0 : index
    %c0_13 = arith.constant 0 : index
    %18 = vector.load %arg6[%c0_12, %c0_13] : memref<256x16xbf16, #tpu.memory_space<vmem>>, vector<256x16xbf16>
    %cst_14 = arith.constant dense<0.000000e+00> : vector<16x16xf32>
    %19 = tpu.matmul %17, %18, %cst_14 {dimension_numbers = #tpu.dot_dimension_numbers<[1], [0], [0], [1], [0, 0, 1, 1], [], []>} : vector<16x256xbf16>, vector<256x16xbf16>, vector<16x16xf32> -> vector<16x16xf32>
    %c0_15 = arith.constant 0 : index
    %c0_16 = arith.constant 0 : index
    %20 = vector.load %arg7[%c0_15, %c0_16] : memref<1x16xf32, #tpu.memory_space<vmem>>, vector<1x16xf32>
    %21 = vector.broadcast %20 : vector<1x16xf32> to vector<16x16xf32>
    %22 = arith.addf %19, %21 : vector<16x16xf32>
    %c0_17 = arith.constant 0 : index
    %c0_18 = arith.constant 0 : index
    %23 = vector.load %arg8[%c0_17, %c0_18] : memref<16x16xf32, #tpu.memory_space<vmem>>, vector<16x16xf32>
    tpu.vector_store %arg8[%c0_17, %c0_18], %22 {strides = array<i32>} : memref<16x16xf32, #tpu.memory_space<vmem>>, vector<16x16xf32>,
    return
  }
  func.func @transform_0(%arg0: i32) -> (i32, i32) {
    %c0_i32 = arith.constant 0 : i32
    %c0_i32_0 = arith.constant 0 : i32
    return %arg0, %c0_i32 : i32, i32
  }
  func.func @transform_1(%arg0: i32) -> (i32, i32) {
    %c0_i32 = arith.constant 0 : i32
    %c0_i32_0 = arith.constant 0 : i32
    %c0_i32_1 = arith.constant 0 : i32
    return %c0_i32, %c0_i32_0 : i32, i32
  }
  func.func @transform_2(%arg0: i32) -> (i32, i32) {
    %c0_i32 = arith.constant 0 : i32
    %c0_i32_0 = arith.constant 0 : i32
    %c0_i32_1 = arith.constant 0 : i32
    return %c0_i32, %c0_i32_0 : i32, i32
  }
  func.func @transform_3(%arg0: i32) -> (i32, i32) {
    %c0_i32 = arith.constant 0 : i32
    %c0_i32_0 = arith.constant 0 : i32
    %c0_i32_1 = arith.constant 0 : i32
    return %c0_i32, %c0_i32_0 : i32, i32
  }
  func.func @transform_4(%arg0: i32) -> (i32, i32) {
    %c0_i32 = arith.constant 0 : i32
    %c0_i32_0 = arith.constant 0 : i32
    %c0_i32_1 = arith.constant 0 : i32
    return %c0_i32, %c0_i32_0 : i32, i32
  }
  func.func @transform_5(%arg0: i32) -> (i32, i32) {
    %c0_i32 = arith.constant 0 : i32
    %c0_i32_0 = arith.constant 0 : i32
    %c0_i32_1 = arith.constant 0 : i32
    return %c0_i32, %c0_i32_0 : i32, i32
  }
  func.func @transform_6(%arg0: i32) -> (i32, i32) {
    %c0_i32 = arith.constant 0 : i32
    %c0_i32_0 = arith.constant 0 : i32
    %c0_i32_1 = arith.constant 0 : i32
    return %c0_i32, %c0_i32_0 : i32, i32
  }
  func.func @transform_7(%arg0: i32) -> (i32, i32) {
    %c0_i32 = arith.constant 0 : i32
    %c0_i32_0 = arith.constant 0 : i32
    return %arg0, %c0_i32 : i32, i32
  }
}

</mosaic_0001>

<llo_original>
// kernel: tpu_custom_call.1
$region0: #{tpu_custom_call.1}
  #allocation0 [shape = 'u32[]', space=smem, size = 0x4, offset = 0x4, fixed_abs, tag = 'smem constant byte address 0x4 - core index']
  #allocation1 [shape = 'u32[72,128]{1,0:T(1,128)}', space=vmem, size = 0x9000, scoped, tag = 'internal scratch']
  %s0 = inlined_call_operand.vmem [shape: f32[8,32], index: 0, kind: input, shape index: {}]
  %s1 = inlined_call_operand.vmem [shape: bf16[32,512], index: 1, kind: input, shape index: {}]
  %s2 = inlined_call_operand.vmem [shape: f32[1,512], index: 2, kind: input, shape index: {}]
  %s3 = inlined_call_operand.hbm [shape: bf16[512,256], index: 3, kind: input, shape index: {}]
  %s4 = inlined_call_operand.vmem [shape: f32[1,256], index: 4, kind: input, shape index: {}]
  %s5 = inlined_call_operand.vmem [shape: bf16[256,16], index: 5, kind: input, shape index: {}]
  %s6 = inlined_call_operand.vmem [shape: f32[1,16], index: 6, kind: input, shape index: {}]
  %s7 = inlined_call_operand.hbm [shape: f32[8,16], index: 7, kind: output, shape index: {}]
  %s8 = sld [smem:[#allocation0]]
  $region42: #{tpu_custom_call.1} parent=0
    _
  %s10 = ssub.s32 1, %s8
  %s11 = scalar_select 0, %s10, %s8
  $region1: #{tpu_custom_call.1} parent=0
    #allocation2 [shape = 'u8[262144]{0}', space=vmem, size = 0x40000, scoped, tag = 'input window, operand 3, single buffered']
    #allocation3 [shape = 's32[1]{0}', space=sflag, size = 0x4, scoped, tag = 'scoped memory for tpu_custom_call.1']
    #allocation4 [shape = 's32[1]{0}', space=sflag, size = 0x4, scoped, tag = 'scoped memory for tpu_custom_call.1']
    #allocation5 [shape = 'u8[8192]{0}', space=vmem, size = 0x2000, scoped, tag = 'output window, operand 0, single buffered']
    %12 = vsyncpa [#allocation3], 0
    %13 = vsyncpa [#allocation4], 0
    // Predicated region
    $region2: #{tpu_custom_call.1} parent=1 // pred_check
      _
    $region3: #{tpu_custom_call.1} parent=1 // pred_check_branch
      %15 = sbr.rel (0) target = $region5
    $region4: #{tpu_custom_call.1} parent=1 // pred_region
      _
    $region5: #{tpu_custom_call.1} parent=1 // pred_fallthru
      _
    // Predicated region
    $region6: #{tpu_custom_call.1} parent=1 // pred_check
      _
    $region7: #{tpu_custom_call.1} parent=1 // pred_check_branch
      %17 = sbr.rel (0) target = $region9
    $region8: #{tpu_custom_call.1} parent=1 // pred_region
      _
    $region9: #{tpu_custom_call.1} parent=1 // pred_fallthru
      _
    // Predicated region
    $region10: #{tpu_custom_call.1} parent=1 // pred_check
      _
    $region11: #{tpu_custom_call.1} parent=1 // pred_check_branch
      %19 = sbr.rel (0) target = $region13
    $region12: #{tpu_custom_call.1} parent=1 // pred_region
      _
    $region13: #{tpu_custom_call.1} parent=1 // pred_fallthru
      _
    // Predicated region
    $region14: #{tpu_custom_call.1} parent=1 // pred_check
      _
    $region15: #{tpu_custom_call.1} parent=1 // pred_check_branch
      %21 = sbr.rel (0) target = $region17
    $region16: #{tpu_custom_call.1} parent=1 // pred_region
      %23 = vsyncadd [#allocation3], 0
      %s24 = sshll.u32 %s3, 4
      %s25 = int_to_ptr.hbm [resolvable:$true] %s24
      %s26 = sshll.u32 [#allocation2], 4
      %s27 = int_to_ptr.vmem [resolvable:$true] %s26
      %32 = dma.hbm_to_vmem [thread:$0]  %s25, 8192, %s27, [#allocation3], 128, 128, 8
    $region17: #{tpu_custom_call.1} parent=1 // pred_fallthru
      _
    // Predicated region
    $region18: #{tpu_custom_call.1} parent=1 // pred_check
      _
    $region19: #{tpu_custom_call.1} parent=1 // pred_check_branch
      %34 = sbr.rel (0) target = $region21
    $region20: #{tpu_custom_call.1} parent=1 // pred_region
      _
    $region21: #{tpu_custom_call.1} parent=1 // pred_fallthru
      _
    // Predicated region
    $region22: #{tpu_custom_call.1} parent=1 // pred_check
      _
    $region23: #{tpu_custom_call.1} parent=1 // pred_check_branch
      %36 = sbr.rel (0) target = $region25
    $region24: #{tpu_custom_call.1} parent=1 // pred_region
      _
    $region25: #{tpu_custom_call.1} parent=1 // pred_fallthru
      _
    // Predicated region
    $region26: #{tpu_custom_call.1} parent=1 // pred_check
      _
    $region27: #{tpu_custom_call.1} parent=1 // pred_check_branch
      %38 = sbr.rel (0) target = $region29
    $region28: #{tpu_custom_call.1} parent=1 // pred_region
      _
    $region29: #{tpu_custom_call.1} parent=1 // pred_fallthru
      _
    // Predicated region
    $region30: #{tpu_custom_call.1} parent=1 // pred_check
      _
    $region31: #{tpu_custom_call.1} parent=1 // pred_check_branch
      %40 = sbr.rel (0) target = $region33
    $region32: #{tpu_custom_call.1} parent=1 // pred_region
      %42 = dma.done [#allocation3], 8192
    $region33: #{tpu_custom_call.1} parent=1 // pred_fallthru
      _
    %v44 = vld [vmem:[%s0] sm:$0xff]
    %v45 = vld [vmem:[%s0 + $0x8] sm:$0xff]
    %v46 = vpack.c.bf16 %v45, %v44
    %v47 = vld [vmem:[%s1] sm:$0xff]
    %v48 = vld [vmem:[%s1 + $0x8] sm:$0xff]
    %v49 = vld [vmem:[%s1 + $0x10] sm:$0xff]
    %v50 = vld [vmem:[%s1 + $0x18] sm:$0xff]
    %v51 = vld [vmem:[%s1 + $0x20] sm:$0xff]
    %v52 = vld [vmem:[%s1 + $0x28] sm:$0xff]
    %v53 = vld [vmem:[%s1 + $0x30] sm:$0xff]
    %v54 = vld [vmem:[%s1 + $0x38] sm:$0xff]
    %v55 = vld [vmem:[%s2] sm:$0xf]
    %v57 = vperm.slane %v55, 0
    %v58 = vperm.slane %v55, 1
    %v59 = vperm.slane %v55, 2
    %v60 = vperm.slane %v55, 3
    %v73 = vunpack.c.l.b16 %v47
    %v74 = vunpack.c.h.b16 %v47
    %v75 = vunpack.c.l.b16 %v48
    %v76 = vunpack.c.h.b16 %v48
    %v77 = vunpack.c.l.b16 %v49
    %v78 = vunpack.c.h.b16 %v49
    %v79 = vunpack.c.l.b16 %v50
    %v80 = vunpack.c.h.b16 %v50
    %v81 = vunpack.c.l.b16 %v51
    %v82 = vunpack.c.h.b16 %v51
    %v83 = vunpack.c.l.b16 %v52
    %v84 = vunpack.c.h.b16 %v52
    %v85 = vunpack.c.l.b16 %v53
    %v86 = vunpack.c.h.b16 %v53
    %v87 = vunpack.c.l.b16 %v54
    %v88 = vunpack.c.h.b16 %v54
    %v89 = vpack.c.b16 %v77, %v73
    %v90 = vpack.c.b16 %v78, %v74
    %v91 = vpack.c.b16 %v79, %v75
    %v92 = vpack.c.b16 %v80, %v76
    %v93 = vpack.c.b16 %v85, %v81
    %v94 = vpack.c.b16 %v86, %v82
    %v95 = vpack.c.b16 %v87, %v83
    %v96 = vpack.c.b16 %v88, %v84
    %vm105 = vcmask 261120
    %v107 = vsel %vm105, %v46, 0
    %109 = vmatpush.bf16.msra.mxu0 0
    %110 = vmatpush.bf16.msra.mxu0 0
    %111 = vmatpush.bf16.msra.mxu0 0
    %112 = vmatpush.bf16.msra.mxu0 0
    %113 = vmatpush.bf16.msra.mxu0 0
    %114 = vmatpush.bf16.msra.mxu0 0
    %115 = vmatpush.bf16.msra.mxu0 %v93
    %116 = vmatpush.bf16.msra.mxu0 %v89
    %117 = vmatmul.bf16.gmra.mxu0 %v107
    %v118 = vpop.f32.mrf.mxu0
    %v119 = vadd.f32 %v57, %v118
    %v120 = vpop.f32.mrf.mxu0
    %v121 = vadd.f32 %v57, %v120
    %122 = vdwg.mxu0
    %123 = vmatpush.bf16.msra.mxu0 0
    %124 = vmatpush.bf16.msra.mxu0 0
    %125 = vmatpush.bf16.msra.mxu0 0
    %126 = vmatpush.bf16.msra.mxu0 0
    %127 = vmatpush.bf16.msra.mxu0 0
    %128 = vmatpush.bf16.msra.mxu0 0
    %129 = vmatpush.bf16.msra.mxu0 %v94
    %130 = vmatpush.bf16.msra.mxu0 %v90
    %131 = vmatmul.bf16.gmra.mxu0 %v107
    %v132 = vpop.f32.mrf.mxu0
    %v133 = vadd.f32 %v58, %v132
    %v134 = vpop.f32.mrf.mxu0
    %v135 = vadd.f32 %v58, %v134
    %136 = vdwg.mxu0
    %137 = vmatpush.bf16.msra.mxu0 0
    %138 = vmatpush.bf16.msra.mxu0 0
    %139 = vmatpush.bf16.msra.mxu0 0
    %140 = vmatpush.bf16.msra.mxu0 0
    %141 = vmatpush.bf16.msra.mxu0 0
    %142 = vmatpush.bf16.msra.mxu0 0
    %143 = vmatpush.bf16.msra.mxu0 %v95
    %144 = vmatpush.bf16.msra.mxu0 %v91
    %145 = vmatmul.bf16.gmra.mxu0 %v107
    %v146 = vpop.f32.mrf.mxu0
    %v147 = vadd.f32 %v59, %v146
    %v148 = vpop.f32.mrf.mxu0
    %v149 = vadd.f32 %v59, %v148
    %150 = vdwg.mxu0
    %151 = vmatpush.bf16.msra.mxu0 0
    %152 = vmatpush.bf16.msra.mxu0 0
    %153 = vmatpush.bf16.msra.mxu0 0
    %154 = vmatpush.bf16.msra.mxu0 0
    %155 = vmatpush.bf16.msra.mxu0 0
    %156 = vmatpush.bf16.msra.mxu0 0
    %157 = vmatpush.bf16.msra.mxu0 %v96
    %158 = vmatpush.bf16.msra.mxu0 %v92
    %159 = vmatmul.bf16.gmra.mxu0 %v107
    %v160 = vpop.f32.mrf.mxu0
    %v161 = vadd.f32 %v60, %v160
    %v162 = vpop.f32.mrf.mxu0
    %v163 = vadd.f32 %v60, %v162
    %164 = vdwg.mxu0
    %v165 = vpack.c.bf16 %v133, %v119
    %v166 = vpack.c.bf16 %v161, %v147
    %v167 = vpack.c.bf16 %v135, %v121
    %v168 = vpack.c.bf16 %v163, %v149
    %v169 = vunpack.c.l.bf16 %v165
    %v170 = vunpack.c.h.bf16 %v165
    %v171 = vunpack.c.l.bf16 %v166
    %v172 = vunpack.c.h.bf16 %v166
    %v173 = vunpack.c.l.bf16 %v167
    %v174 = vunpack.c.h.bf16 %v167
    %v175 = vunpack.c.l.bf16 %v168
    %v176 = vunpack.c.h.bf16 %v168
    %v177 = vmax.f32 %v169, 0.0
    %v178 = vmax.f32 %v170, 0.0
    %v179 = vmax.f32 %v171, 0.0
    %v180 = vmax.f32 %v172, 0.0
    %v181 = vmax.f32 %v173, 0.0
    %v182 = vmax.f32 %v174, 0.0
    %v183 = vmax.f32 %v175, 0.0
    %v184 = vmax.f32 %v176, 0.0
    %v185 = vpack.c.bf16 %v181, %v177
    %v186 = vpack.c.bf16 %v182, %v178
    %v187 = vpack.c.bf16 %v183, %v179
    %v188 = vpack.c.bf16 %v184, %v180
    %v189 = vld [vmem:[#allocation2] sm:$0xff]
    %v190 = vld [vmem:[#allocation2 + $0x8] sm:$0xff]
    %v191 = vld [vmem:[#allocation2 + $0x10] sm:$0xff]
    %v192 = vld [vmem:[#allocation2 + $0x18] sm:$0xff]
    %v193 = vld [vmem:[#allocation2 + $0x20] sm:$0xff]
    %v194 = vld [vmem:[#allocation2 + $0x28] sm:$0xff]
    %v195 = vld [vmem:[#allocation2 + $0x30] sm:$0xff]
    %v196 = vld [vmem:[#allocation2 + $0x38] sm:$0xff]
    %v197 = vld [vmem:[#allocation2 + $0x40] sm:$0xff]
    %v198 = vld [vmem:[#allocation2 + $0x48] sm:$0xff]
    %v199 = vld [vmem:[#allocation2 + $0x50] sm:$0xff]
    %v200 = vld [vmem:[#allocation2 + $0x58] sm:$0xff]
    %v201 = vld [vmem:[#allocation2 + $0x60] sm:$0xff]
    %v202 = vld [vmem:[#allocation2 + $0x68] sm:$0xff]
    %v203 = vld [vmem:[#allocation2 + $0x70] sm:$0xff]
    %v204 = vld [vmem:[#allocation2 + $0x78] sm:$0xff]
    %v205 = vld [vmem:[#allocation2 + $0x80] sm:$0xff]
    %v206 = vld [vmem:[#allocation2 + $0x88] sm:$0xff]
    %v207 = vld [vmem:[#allocation2 + $0x90] sm:$0xff]
    %v208 = vld [vmem:[#allocation2 + $0x98] sm:$0xff]
    %v209 = vld [vmem:[#allocation2 + $0xa0] sm:$0xff]
    %v210 = vld [vmem:[#allocation2 + $0xa8] sm:$0xff]
    %v211 = vld [vmem:[#allocation2 + $0xb0] sm:$0xff]
    %v212 = vld [vmem:[#allocation2 + $0xb8] sm:$0xff]
    %v213 = vld [vmem:[#allocation2 + $0xc0] sm:$0xff]
    %v214 = vld [vmem:[#allocation2 + $0xc8] sm:$0xff]
    %v215 = vld [vmem:[#allocation2 + $0xd0] sm:$0xff]
    %v216 = vld [vmem:[#allocation2 + $0xd8] sm:$0xff]
    %v217 = vld [vmem:[#allocation2 + $0xe0] sm:$0xff]
    %v218 = vld [vmem:[#allocation2 + $0xe8] sm:$0xff]
    %v219 = vld [vmem:[#allocation2 + $0xf0] sm:$0xff]
    %v220 = vld [vmem:[#allocation2 + $0xf8] sm:$0xff]
    %v221 = vld [vmem:[#allocation2 + $0x100] sm:$0xff]
    %v222 = vld [vmem:[#allocation2 + $0x108] sm:$0xff]
    %v223 = vld [vmem:[#allocation2 + $0x110] sm:$0xff]
    %v224 = vld [vmem:[#allocation2 + $0x118] sm:$0xff]
    %v225 = vld [vmem:[#allocation2 + $0x120] sm:$0xff]
    %v226 = vld [vmem:[#allocation2 + $0x128] sm:$0xff]
    %v227 = vld [vmem:[#allocation2 + $0x130] sm:$0xff]
    %v228 = vld [vmem:[#allocation2 + $0x138] sm:$0xff]
    %v229 = vld [vmem:[#allocation2 + $0x140] sm:$0xff]
    %v230 = vld [vmem:[#allocation2 + $0x148] sm:$0xff]
    %v231 = vld [vmem:[#allocation2 + $0x150] sm:$0xff]
    %v232 = vld [vmem:[#allocation2 + $0x158] sm:$0xff]
    %v233 = vld [vmem:[#allocation2 + $0x160] sm:$0xff]
    %v234 = vld [vmem:[#allocation2 + $0x168] sm:$0xff]
    %v235 = vld [vmem:[#allocation2 + $0x170] sm:$0xff]
    %v236 = vld [vmem:[#allocation2 + $0x178] sm:$0xff]
    %v237 = vld [vmem:[#allocation2 + $0x180] sm:$0xff]
    %v238 = vld [vmem:[#allocation2 + $0x188] sm:$0xff]
    %v239 = vld [vmem:[#allocation2 + $0x190] sm:$0xff]
    %v240 = vld [vmem:[#allocation2 + $0x198] sm:$0xff]
    %v241 = vld [vmem:[#allocation2 + $0x1a0] sm:$0xff]
    %v242 = vld [vmem:[#allocation2 + $0x1a8] sm:$0xff]
    %v243 = vld [vmem:[#allocation2 + $0x1b0] sm:$0xff]
    %v244 = vld [vmem:[#allocation2 + $0x1b8] sm:$0xff]
    %v245 = vld [vmem:[#allocation2 + $0x1c0] sm:$0xff]
    %v246 = vld [vmem:[#allocation2 + $0x1c8] sm:$0xff]
    %v247 = vld [vmem:[#allocation2 + $0x1d0] sm:$0xff]
    %v248 = vld [vmem:[#allocation2 + $0x1d8] sm:$0xff]
    %v249 = vld [vmem:[#allocation2 + $0x1e0] sm:$0xff]
    %v250 = vld [vmem:[#allocation2 + $0x1e8] sm:$0xff]
    %v251 = vld [vmem:[#allocation2 + $0x1f0] sm:$0xff]
    %v252 = vld [vmem:[#allocation2 + $0x1f8] sm:$0xff]
    %v253 = vld [vmem:[%s4] sm:$0x3]
    %v255 = vperm.slane %v253, 0
    %v256 = vperm.slane %v253, 1
    %v323 = vunpack.c.l.b16 %v189
    %v324 = vunpack.c.h.b16 %v189
    %v325 = vunpack.c.l.b16 %v190
    %v326 = vunpack.c.h.b16 %v190
    %v327 = vunpack.c.l.b16 %v191
    %v328 = vunpack.c.h.b16 %v191
    %v329 = vunpack.c.l.b16 %v192
    %v330 = vunpack.c.h.b16 %v192
    %v331 = vunpack.c.l.b16 %v193
    %v332 = vunpack.c.h.b16 %v193
    %v333 = vunpack.c.l.b16 %v194
    %v334 = vunpack.c.h.b16 %v194
    %v335 = vunpack.c.l.b16 %v195
    %v336 = vunpack.c.h.b16 %v195
    %v337 = vunpack.c.l.b16 %v196
    %v338 = vunpack.c.h.b16 %v196
    %v339 = vunpack.c.l.b16 %v197
    %v340 = vunpack.c.h.b16 %v197
    %v341 = vunpack.c.l.b16 %v198
    %v342 = vunpack.c.h.b16 %v198
    %v343 = vunpack.c.l.b16 %v199
    %v344 = vunpack.c.h.b16 %v199
    %v345 = vunpack.c.l.b16 %v200
    %v346 = vunpack.c.h.b16 %v200
    %v347 = vunpack.c.l.b16 %v201
    %v348 = vunpack.c.h.b16 %v201
    %v349 = vunpack.c.l.b16 %v202
    %v350 = vunpack.c.h.b16 %v202
    %v351 = vunpack.c.l.b16 %v203
    %v352 = vunpack.c.h.b16 %v203
    %v353 = vunpack.c.l.b16 %v204
    %v354 = vunpack.c.h.b16 %v204
    %v355 = vunpack.c.l.b16 %v205
    %v356 = vunpack.c.h.b16 %v205
    %v357 = vunpack.c.l.b16 %v206
    %v358 = vunpack.c.h.b16 %v206
    %v359 = vunpack.c.l.b16 %v207
    %v360 = vunpack.c.h.b16 %v207
    %v361 = vunpack.c.l.b16 %v208
    %v362 = vunpack.c.h.b16 %v208
    %v363 = vunpack.c.l.b16 %v209
    %v364 = vunpack.c.h.b16 %v209
    %v365 = vunpack.c.l.b16 %v210
    %v366 = vunpack.c.h.b16 %v210
    %v367 = vunpack.c.l.b16 %v211
    %v368 = vunpack.c.h.b16 %v211
    %v369 = vunpack.c.l.b16 %v212
    %v370 = vunpack.c.h.b16 %v212
    %v371 = vunpack.c.l.b16 %v213
    %v372 = vunpack.c.h.b16 %v213
    %v373 = vunpack.c.l.b16 %v214
    %v374 = vunpack.c.h.b16 %v214
    %v375 = vunpack.c.l.b16 %v215
    %v376 = vunpack.c.h.b16 %v215
    %v377 = vunpack.c.l.b16 %v216
    %v378 = vunpack.c.h.b16 %v216
    %v379 = vunpack.c.l.b16 %v217
    %v380 = vunpack.c.h.b16 %v217
    %v381 = vunpack.c.l.b16 %v218
    %v382 = vunpack.c.h.b16 %v218
    %v383 = vunpack.c.l.b16 %v219
    %v384 = vunpack.c.h.b16 %v219
    %v385 = vunpack.c.l.b16 %v220
    %v386 = vunpack.c.h.b16 %v220
    %v387 = vunpack.c.l.b16 %v221
    %v388 = vunpack.c.h.b16 %v221
    %v389 = vunpack.c.l.b16 %v222
    %v390 = vunpack.c.h.b16 %v222
    %v391 = vunpack.c.l.b16 %v223
    %v392 = vunpack.c.h.b16 %v223
    %v393 = vunpack.c.l.b16 %v224
    %v394 = vunpack.c.h.b16 %v224
    %v395 = vunpack.c.l.b16 %v225
    %v396 = vunpack.c.h.b16 %v225
    %v397 = vunpack.c.l.b16 %v226
    %v398 = vunpack.c.h.b16 %v226
    %v399 = vunpack.c.l.b16 %v227
    %v400 = vunpack.c.h.b16 %v227
    %v401 = vunpack.c.l.b16 %v228
    %v402 = vunpack.c.h.b16 %v228
    %v403 = vunpack.c.l.b16 %v229
    %v404 = vunpack.c.h.b16 %v229
    %v405 = vunpack.c.l.b16 %v230
    %v406 = vunpack.c.h.b16 %v230
    %v407 = vunpack.c.l.b16 %v231
    %v408 = vunpack.c.h.b16 %v231
    %v409 = vunpack.c.l.b16 %v232
    %v410 = vunpack.c.h.b16 %v232
    %v411 = vunpack.c.l.b16 %v233
    %v412 = vunpack.c.h.b16 %v233
    %v413 = vunpack.c.l.b16 %v234
    %v414 = vunpack.c.h.b16 %v234
    %v415 = vunpack.c.l.b16 %v235
    %v416 = vunpack.c.h.b16 %v235
    %v417 = vunpack.c.l.b16 %v236
    %v418 = vunpack.c.h.b16 %v236
    %v419 = vunpack.c.l.b16 %v237
    %v420 = vunpack.c.h.b16 %v237
    %v421 = vunpack.c.l.b16 %v238
    %v422 = vunpack.c.h.b16 %v238
    %v423 = vunpack.c.l.b16 %v239
    %v424 = vunpack.c.h.b16 %v239
    %v425 = vunpack.c.l.b16 %v240
    %v426 = vunpack.c.h.b16 %v240
    %v427 = vunpack.c.l.b16 %v241
    %v428 = vunpack.c.h.b16 %v241
    %v429 = vunpack.c.l.b16 %v242
    %v430 = vunpack.c.h.b16 %v242
    %v431 = vunpack.c.l.b16 %v243
    %v432 = vunpack.c.h.b16 %v243
    %v433 = vunpack.c.l.b16 %v244
    %v434 = vunpack.c.h.b16 %v244
    %v435 = vunpack.c.l.b16 %v245
    %v436 = vunpack.c.h.b16 %v245
    %v437 = vunpack.c.l.b16 %v246
    %v438 = vunpack.c.h.b16 %v246
    %v439 = vunpack.c.l.b16 %v247
    %v440 = vunpack.c.h.b16 %v247
    %v441 = vunpack.c.l.b16 %v248
    %v442 = vunpack.c.h.b16 %v248
    %v443 = vunpack.c.l.b16 %v249
    %v444 = vunpack.c.h.b16 %v249
    %v445 = vunpack.c.l.b16 %v250
    %v446 = vunpack.c.h.b16 %v250
    %v447 = vunpack.c.l.b16 %v251
    %v448 = vunpack.c.h.b16 %v251
    %v449 = vunpack.c.l.b16 %v252
    %v450 = vunpack.c.h.b16 %v252
    %v451 = vpack.c.b16 %v325, %v323
    %v452 = vpack.c.b16 %v326, %v324
    %v453 = vpack.c.b16 %v329, %v327
    %v454 = vpack.c.b16 %v330, %v328
    %v455 = vpack.c.b16 %v333, %v331
    %v456 = vpack.c.b16 %v334, %v332
    %v457 = vpack.c.b16 %v337, %v335
    %v458 = vpack.c.b16 %v338, %v336
    %v459 = vpack.c.b16 %v341, %v339
    %v460 = vpack.c.b16 %v342, %v340
    %v461 = vpack.c.b16 %v345, %v343
    %v462 = vpack.c.b16 %v346, %v344
    %v463 = vpack.c.b16 %v349, %v347
    %v464 = vpack.c.b16 %v350, %v348
    %v465 = vpack.c.b16 %v353, %v351
    %v466 = vpack.c.b16 %v354, %v352
    %v467 = vpack.c.b16 %v357, %v355
    %v468 = vpack.c.b16 %v358, %v356
    %v469 = vpack.c.b16 %v361, %v359
    %v470 = vpack.c.b16 %v362, %v360
    %v471 = vpack.c.b16 %v365, %v363
    %v472 = vpack.c.b16 %v366, %v364
    %v473 = vpack.c.b16 %v369, %v367
    %v474 = vpack.c.b16 %v370, %v368
    %v475 = vpack.c.b16 %v373, %v371
    %v476 = vpack.c.b16 %v374, %v372
    %v477 = vpack.c.b16 %v377, %v375
    %v478 = vpack.c.b16 %v378, %v376
    %v479 = vpack.c.b16 %v381, %v379
    %v480 = vpack.c.b16 %v382, %v380
    %v481 = vpack.c.b16 %v385, %v383
    %v482 = vpack.c.b16 %v386, %v384
    %v483 = vpack.c.b16 %v389, %v387
    %v484 = vpack.c.b16 %v390, %v388
    %v485 = vpack.c.b16 %v393, %v391
    %v486 = vpack.c.b16 %v394, %v392
    %v487 = vpack.c.b16 %v397, %v395
    %v488 = vpack.c.b16 %v398, %v396
    %v489 = vpack.c.b16 %v401, %v399
    %v490 = vpack.c.b16 %v402, %v400
    %v491 = vpack.c.b16 %v405, %v403
    %v492 = vpack.c.b16 %v406, %v404
    %v493 = vpack.c.b16 %v409, %v407
    %v494 = vpack.c.b16 %v410, %v408
    %v495 = vpack.c.b16 %v413, %v411
    %v496 = vpack.c.b16 %v414, %v412
    %v497 = vpack.c.b16 %v417, %v415
    %v498 = vpack.c.b16 %v418, %v416
    %v499 = vpack.c.b16 %v421, %v419
    %v500 = vpack.c.b16 %v422, %v420
    %v501 = vpack.c.b16 %v425, %v423
    %v502 = vpack.c.b16 %v426, %v424
    %v503 = vpack.c.b16 %v429, %v427
    %v504 = vpack.c.b16 %v430, %v428
    %v505 = vpack.c.b16 %v433, %v431
    %v506 = vpack.c.b16 %v434, %v432
    %v507 = vpack.c.b16 %v437, %v435
    %v508 = vpack.c.b16 %v438, %v436
    %v509 = vpack.c.b16 %v441, %v439
    %v510 = vpack.c.b16 %v442, %v440
    %v511 = vpack.c.b16 %v445, %v443
    %v512 = vpack.c.b16 %v446, %v444
    %v513 = vpack.c.b16 %v449, %v447
    %v514 = vpack.c.b16 %v450, %v448
    %579 = vmatpush.bf16.msra.mxu0 %v465
    %580 = vmatpush.bf16.msra.mxu0 %v463
    %581 = vmatpush.bf16.msra.mxu0 %v461
    %582 = vmatpush.bf16.msra.mxu0 %v459
    %583 = vmatpush.bf16.msra.mxu0 %v457
    %584 = vmatpush.bf16.msra.mxu0 %v455
    %585 = vmatpush.bf16.msra.mxu0 %v453
    %586 = vmatpush.bf16.msra.mxu0 %v451
    %587 = vmatmul.bf16.gmra.mxu0 %v185
    %v588 = vpop.f32.mrf.mxu0
    %v589 = vadd.f32 %v255, %v588
    %v590 = vpop.f32.mrf.mxu0
    %v591 = vadd.f32 %v255, %v590
    %592 = vdwg.mxu0
    %593 = vmatpush.bf16.msra.mxu0 %v481
    %594 = vmatpush.bf16.msra.mxu0 %v479
    %595 = vmatpush.bf16.msra.mxu0 %v477
    %596 = vmatpush.bf16.msra.mxu0 %v475
    %597 = vmatpush.bf16.msra.mxu0 %v473
    %598 = vmatpush.bf16.msra.mxu0 %v471
    %599 = vmatpush.bf16.msra.mxu0 %v469
    %600 = vmatpush.bf16.msra.mxu0 %v467
    %601 = vmatmul.bf16.gmra.mxu0 %v186
    %v602 = vpop.f32.mrf.mxu0
    %v603 = vadd.f32 %v589, %v602
    %v604 = vpop.f32.mrf.mxu0
    %v605 = vadd.f32 %v591, %v604
    %606 = vdwg.mxu0
    %607 = vmatpush.bf16.msra.mxu0 %v497
    %608 = vmatpush.bf16.msra.mxu0 %v495
    %609 = vmatpush.bf16.msra.mxu0 %v493
    %610 = vmatpush.bf16.msra.mxu0 %v491
    %611 = vmatpush.bf16.msra.mxu0 %v489
    %612 = vmatpush.bf16.msra.mxu0 %v487
    %613 = vmatpush.bf16.msra.mxu0 %v485
    %614 = vmatpush.bf16.msra.mxu0 %v483
    %615 = vmatmul.bf16.gmra.mxu0 %v187
    %v616 = vpop.f32.mrf.mxu0
    %v617 = vadd.f32 %v603, %v616
    %v618 = vpop.f32.mrf.mxu0
    %v619 = vadd.f32 %v605, %v618
    %620 = vdwg.mxu0
    %621 = vmatpush.bf16.msra.mxu0 %v513
    %622 = vmatpush.bf16.msra.mxu0 %v511
    %623 = vmatpush.bf16.msra.mxu0 %v509
    %624 = vmatpush.bf16.msra.mxu0 %v507
    %625 = vmatpush.bf16.msra.mxu0 %v505
    %626 = vmatpush.bf16.msra.mxu0 %v503
    %627 = vmatpush.bf16.msra.mxu0 %v501
    %628 = vmatpush.bf16.msra.mxu0 %v499
    %629 = vmatmul.bf16.gmra.mxu0 %v188
    %v630 = vpop.f32.mrf.mxu0
    %v631 = vadd.f32 %v617, %v630
    %v632 = vpop.f32.mrf.mxu0
    %v633 = vadd.f32 %v619, %v632
    %634 = vdwg.mxu0
    %635 = vmatpush.bf16.msra.mxu0 %v466
    %636 = vmatpush.bf16.msra.mxu0 %v464
    %637 = vmatpush.bf16.msra.mxu0 %v462
    %638 = vmatpush.bf16.msra.mxu0 %v460
    %639 = vmatpush.bf16.msra.mxu0 %v458
    %640 = vmatpush.bf16.msra.mxu0 %v456
    %641 = vmatpush.bf16.msra.mxu0 %v454
    %642 = vmatpush.bf16.msra.mxu0 %v452
    %643 = vmatmul.bf16.gmra.mxu0 %v185
    %v644 = vpop.f32.mrf.mxu0
    %v645 = vadd.f32 %v256, %v644
    %v646 = vpop.f32.mrf.mxu0
    %v647 = vadd.f32 %v256, %v646
    %648 = vdwg.mxu0
    %649 = vmatpush.bf16.msra.mxu0 %v482
    %650 = vmatpush.bf16.msra.mxu0 %v480
    %651 = vmatpush.bf16.msra.mxu0 %v478
    %652 = vmatpush.bf16.msra.mxu0 %v476
    %653 = vmatpush.bf16.msra.mxu0 %v474
    %654 = vmatpush.bf16.msra.mxu0 %v472
    %655 = vmatpush.bf16.msra.mxu0 %v470
    %656 = vmatpush.bf16.msra.mxu0 %v468
    %657 = vmatmul.bf16.gmra.mxu0 %v186
    %v658 = vpop.f32.mrf.mxu0
    %v659 = vadd.f32 %v645, %v658
    %v660 = vpop.f32.mrf.mxu0
    %v661 = vadd.f32 %v647, %v660
    %662 = vdwg.mxu0
    %663 = vmatpush.bf16.msra.mxu0 %v498
    %664 = vmatpush.bf16.msra.mxu0 %v496
    %665 = vmatpush.bf16.msra.mxu0 %v494
    %666 = vmatpush.bf16.msra.mxu0 %v492
    %667 = vmatpush.bf16.msra.mxu0 %v490
    %668 = vmatpush.bf16.msra.mxu0 %v488
    %669 = vmatpush.bf16.msra.mxu0 %v486
    %670 = vmatpush.bf16.msra.mxu0 %v484
    %671 = vmatmul.bf16.gmra.mxu0 %v187
    %v672 = vpop.f32.mrf.mxu0
    %v673 = vadd.f32 %v659, %v672
    %v674 = vpop.f32.mrf.mxu0
    %v675 = vadd.f32 %v661, %v674
    %676 = vdwg.mxu0
    %677 = vmatpush.bf16.msra.mxu0 %v514
    %678 = vmatpush.bf16.msra.mxu0 %v512
    %679 = vmatpush.bf16.msra.mxu0 %v510
    %680 = vmatpush.bf16.msra.mxu0 %v508
    %681 = vmatpush.bf16.msra.mxu0 %v506
    %682 = vmatpush.bf16.msra.mxu0 %v504
    %683 = vmatpush.bf16.msra.mxu0 %v502
    %684 = vmatpush.bf16.msra.mxu0 %v500
    %685 = vmatmul.bf16.gmra.mxu0 %v188
    %v686 = vpop.f32.mrf.mxu0
    %v687 = vadd.f32 %v673, %v686
    %v688 = vpop.f32.mrf.mxu0
    %v689 = vadd.f32 %v675, %v688
    %690 = vdwg.mxu0
    %v691 = vpack.c.bf16 %v687, %v631
    %v692 = vpack.c.bf16 %v689, %v633
    %v693 = vunpack.c.l.bf16 %v691
    %v694 = vunpack.c.h.bf16 %v691
    %v695 = vunpack.c.l.bf16 %v692
    %v696 = vunpack.c.h.bf16 %v692
    %v697 = vmax.f32 %v693, 0.0
    %v698 = vmax.f32 %v694, 0.0
    %v699 = vmax.f32 %v695, 0.0
    %v700 = vmax.f32 %v696, 0.0
    %v701 = vpack.c.bf16 %v699, %v697
    %v702 = vpack.c.bf16 %v700, %v698
    %v703 = vld [vmem:[%s5] sm:$0xf]
    %v704 = vld [vmem:[%s5 + $0x4] sm:$0xf]
    %v705 = vld [vmem:[%s5 + $0x8] sm:$0xf]
    %v706 = vld [vmem:[%s5 + $0xc] sm:$0xf]
    %v707 = vld [vmem:[%s5 + $0x10] sm:$0xf]
    %v708 = vld [vmem:[%s5 + $0x14] sm:$0xf]
    %v709 = vld [vmem:[%s5 + $0x18] sm:$0xf]
    %v710 = vld [vmem:[%s5 + $0x1c] sm:$0xf]
    %v711 = vld [vmem:[%s5 + $0x20] sm:$0xf]
    %v712 = vld [vmem:[%s5 + $0x24] sm:$0xf]
    %v713 = vld [vmem:[%s5 + $0x28] sm:$0xf]
    %v714 = vld [vmem:[%s5 + $0x2c] sm:$0xf]
    %v715 = vld [vmem:[%s5 + $0x30] sm:$0xf]
    %v716 = vld [vmem:[%s5 + $0x34] sm:$0xf]
    %v717 = vld [vmem:[%s5 + $0x38] sm:$0xf]
    %v718 = vld [vmem:[%s5 + $0x3c] sm:$0xf]
    %v719 = vld [vmem:[%s5 + $0x40] sm:$0xf]
    %v720 = vld [vmem:[%s5 + $0x44] sm:$0xf]
    %v721 = vld [vmem:[%s5 + $0x48] sm:$0xf]
    %v722 = vld [vmem:[%s5 + $0x4c] sm:$0xf]
    %v723 = vld [vmem:[%s5 + $0x50] sm:$0xf]
    %v724 = vld [vmem:[%s5 + $0x54] sm:$0xf]
    %v725 = vld [vmem:[%s5 + $0x58] sm:$0xf]
    %v726 = vld [vmem:[%s5 + $0x5c] sm:$0xf]
    %v727 = vld [vmem:[%s5 + $0x60] sm:$0xf]
    %v728 = vld [vmem:[%s5 + $0x64] sm:$0xf]
    %v729 = vld [vmem:[%s5 + $0x68] sm:$0xf]
    %v730 = vld [vmem:[%s5 + $0x6c] sm:$0xf]
    %v731 = vld [vmem:[%s5 + $0x70] sm:$0xf]
    %v732 = vld [vmem:[%s5 + $0x74] sm:$0xf]
    %v733 = vld [vmem:[%s5 + $0x78] sm:$0xf]
    %v734 = vld [vmem:[%s5 + $0x7c] sm:$0xf]
    %v735 = vld [vmem:[%s6] sm:$0x1]
    %v737 = vperm.slane %v735, 0
    %v771 = vunpack.c.l.b16 %v703
    %v772 = vunpack.c.l.b16 %v704
    %v773 = vunpack.c.l.b16 %v705
    %v774 = vunpack.c.l.b16 %v706
    %v775 = vunpack.c.l.b16 %v707
    %v776 = vunpack.c.l.b16 %v708
    %v777 = vunpack.c.l.b16 %v709
    %v778 = vunpack.c.l.b16 %v710
    %v779 = vunpack.c.l.b16 %v711
    %v780 = vunpack.c.l.b16 %v712
    %v781 = vunpack.c.l.b16 %v713
    %v782 = vunpack.c.l.b16 %v714
    %v783 = vunpack.c.l.b16 %v715
    %v784 = vunpack.c.l.b16 %v716
    %v785 = vunpack.c.l.b16 %v717
    %v786 = vunpack.c.l.b16 %v718
    %v787 = vunpack.c.l.b16 %v719
    %v788 = vunpack.c.l.b16 %v720
    %v789 = vunpack.c.l.b16 %v721
    %v790 = vunpack.c.l.b16 %v722
    %v791 = vunpack.c.l.b16 %v723
    %v792 = vunpack.c.l.b16 %v724
    %v793 = vunpack.c.l.b16 %v725
    %v794 = vunpack.c.l.b16 %v726
    %v795 = vunpack.c.l.b16 %v727
    %v796 = vunpack.c.l.b16 %v728
    %v797 = vunpack.c.l.b16 %v729
    %v798 = vunpack.c.l.b16 %v730
    %v799 = vunpack.c.l.b16 %v731
    %v800 = vunpack.c.l.b16 %v732
    %v801 = vunpack.c.l.b16 %v733
    %v802 = vunpack.c.l.b16 %v734
    %v803 = vpack.c.b16 %v772, %v771
    %v804 = vpack.c.b16 %v774, %v773
    %v805 = vpack.c.b16 %v776, %v775
    %v806 = vpack.c.b16 %v778, %v777
    %v807 = vpack.c.b16 %v780, %v779
    %v808 = vpack.c.b16 %v782, %v781
    %v809 = vpack.c.b16 %v784, %v783
    %v810 = vpack.c.b16 %v786, %v785
    %v811 = vpack.c.b16 %v788, %v787
    %v812 = vpack.c.b16 %v790, %v789
    %v813 = vpack.c.b16 %v792, %v791
    %v814 = vpack.c.b16 %v794, %v793
    %v815 = vpack.c.b16 %v796, %v795
    %v816 = vpack.c.b16 %v798, %v797
    %v817 = vpack.c.b16 %v800, %v799
    %v818 = vpack.c.b16 %v802, %v801
    %835 = vmatpush.bf16.msra.mxu0 %v810
    %836 = vmatpush.bf16.msra.mxu0 %v809
    %837 = vmatpush.bf16.msra.mxu0 %v808
    %838 = vmatpush.bf16.msra.mxu0 %v807
    %839 = vmatpush.bf16.msra.mxu0 %v806
    %840 = vmatpush.bf16.msra.mxu0 %v805
    %841 = vmatpush.bf16.msra.mxu0 %v804
    %842 = vmatpush.bf16.msra.mxu0 %v803
    %843 = vmatmul.bf16.gmra.mxu0 %v701
    %v844 = vpop.f32.mrf.mxu0
    %v845 = vadd.f32 %v737, %v844
    %v846 = vpop.f32.mrf.mxu0
    %v847 = vadd.f32 %v737, %v846
    %848 = vdwg.mxu0
    %849 = vmatpush.bf16.msra.mxu0 %v818
    %850 = vmatpush.bf16.msra.mxu0 %v817
    %851 = vmatpush.bf16.msra.mxu0 %v816
    %852 = vmatpush.bf16.msra.mxu0 %v815
    %853 = vmatpush.bf16.msra.mxu0 %v814
    %854 = vmatpush.bf16.msra.mxu0 %v813
    %855 = vmatpush.bf16.msra.mxu0 %v812
    %856 = vmatpush.bf16.msra.mxu0 %v811
    %857 = vmatmul.bf16.gmra.mxu0 %v702
    %v858 = vpop.f32.mrf.mxu0
    %v859 = vadd.f32 %v845, %v858
    %v860 = vpop.f32.mrf.mxu0
    %v861 = vadd.f32 %v847, %v860
    %862 = vdwg.mxu0
    %vm863 = vcmask 130048
    %864 = vst.msk [vmem:[#allocation5] sm:$0xff] %vm863, %v859
    %865 = vst.msk [vmem:[#allocation5 + $0x8] sm:$0xff] %vm863, %v861
    // Predicated region
    $region34: #{tpu_custom_call.1} parent=1 // pred_check
      _
    $region35: #{tpu_custom_call.1} parent=1 // pred_check_branch
      %867 = sbr.rel (0) target = $region37
    $region36: #{tpu_custom_call.1} parent=1 // pred_region
      %869 = vsyncadd [#allocation4], 128
      %s870 = sshll.u32 [#allocation5], 4
      %s871 = int_to_ptr.vmem [resolvable:$true] %s870
      %s872 = sshll.u32 %s7, 4
      %s873 = int_to_ptr.hbm [resolvable:$true] %s872
      %878 = dma.vmem_to_hbm [thread:$0]  %s871, 128, %s873, [#allocation4], 128, 128, 8
    $region37: #{tpu_custom_call.1} parent=1 // pred_fallthru
      _
    // Predicated region
    $region38: #{tpu_custom_call.1} parent=1 // pred_check
      _
    $region39: #{tpu_custom_call.1} parent=1 // pred_check_branch
      %880 = sbr.rel (0) target = $region41
    $region40: #{tpu_custom_call.1} parent=1 // pred_region
      %882 = dma.done [#allocation4], 256
    $region41: #{tpu_custom_call.1} parent=1 // pred_fallthru
      _
    %883 = vsyncpa [#allocation3], 1
    %884 = vsyncpa [#allocation4], 1

</llo_original>
